<compile_context>
chip_gen: v7x
topology: tpu7x:2x2x1
jax: 0.10.0
libtpu: 0.0.40
codegen_flags: <defaults>
</compile_context>

<pallas_src>
import jax
import jax.numpy as jnp
from jax.experimental import pallas as pl
from jax.experimental.pallas import tpu as pltpu


def _round_up(x, m):
    return (x + m - 1) // m * m


def cnn_emb_kernel(oid_ref, mtaps_ref, bconv_ref, whw_ref, bhw_ref, out_ref):
    """One block of BN words.

    oid_ref  : (k, BN, W) int32        offset char ids (id + j*Vp); -1 = padding
    mtaps_ref: (Kp, e_word) bf16       char table folded into the k conv taps,
                                       stacked row-wise (tap j -> rows
                                       [j*Vp, j*Vp+vocab)), zero-padded to Kp
    bconv_ref: (1, e_word) f32         conv bias
    whw_ref  : (e_word, 2*e_word) bf16 [Wproj^T | Wgate^T]
    bhw_ref  : (1, 2*e_word) f32       [bproj | bgate]
    out_ref  : (BN, e_word)            output (bf16 by default)
    """
    k, bn, W = oid_ref.shape
    kp, e_word = mtaps_ref.shape

    # Combined one-hot over the fused contraction dim:
    #   oh[n, w, j*Vp + id(n, w+j)] = 1 for every valid tap j.
    # The -1 sentinel never matches the (non-negative) iota, reproducing
    # Conv1d's zero padding exactly.
    iota_kp = jax.lax.broadcasted_iota(jnp.int32, (bn, W, kp), 2)
    oh = oid_ref[0][:, :, None] == iota_kp
    for j in range(1, k):                                  # static unroll, k=5
        oh = jnp.logical_or(oh, oid_ref[j][:, :, None] == iota_kp)
    oh = oh.astype(jnp.bfloat16)

    # Embedding gather + Conv1d over all k taps as ONE MXU matmul (f32 acc).
    conv = jnp.dot(oh.reshape(bn * W, kp), mtaps_ref[...],
                   preferred_element_type=jnp.float32)     # (BN*W, e_word)

    # Global max-pool over word positions; conv bias + ReLU hoisted past the
    # pool (exact: bias is constant over W and ReLU is monotone).
    pooled = jnp.max(conv.reshape(bn, W, e_word), axis=1)  # (BN, e_word)
    pooled = jnp.maximum(pooled + bconv_ref[...], 0.0)

    # Highway: fused proj+gate matmul (bf16 operands, f32 accumulation).
    hw = jnp.dot(pooled.astype(jnp.bfloat16), whw_ref[...],
                 preferred_element_type=jnp.float32) + bhw_ref[...]
    proj = jnp.maximum(hw[:, :e_word], 0.0)
    gate = pl.reciprocal(1.0 + jnp.exp(-hw[:, e_word:]), approx=True)
    out_ref[...] = (pooled + gate * (proj - pooled)).astype(out_ref.dtype)


def cnn_embeddings(char_ids, char_vectors, wconv, bconv,
                   wproj, bproj, wgate, bgate, *, k=5, block_n=256,
                   out_dtype=jnp.bfloat16, vmem_limit_bytes=None):
    """char_ids: (S, B, W) int32 -> (S, B, e_word) in `out_dtype`."""
    S, B, W = char_ids.shape
    vocab, e_char = char_vectors.shape
    e_word = wconv.shape[0]                  # PyTorch conv weight is (out, in, k)
    pad = (k - 1) // 2
    N = S * B

    # ---- weight prep (f32 math; bf16 only at the MXU operands) ----
    # Fold the char embedding table into each conv tap, stack taps row-wise into
    # one contraction matrix, and pad the contraction dim to a lane-dense,
    # MXU-friendly multiple of 128 (k*Vp = 160 -> Kp = 256 for vocab<=32).
    Vp = _round_up(vocab, 16)                # bf16 sublane pack
    Kp = _round_up(k * Vp, 128)
    mtaps = jnp.einsum('vc,ocj->jvo', char_vectors.astype(jnp.float32),
                       wconv.astype(jnp.float32))           # (k, vocab, e_word)
    mtaps = jnp.pad(mtaps, ((0, 0), (0, Vp - vocab), (0, 0)))
    mtaps = mtaps.reshape(k * Vp, e_word)
    mtaps = jnp.pad(mtaps, ((0, Kp - k * Vp), (0, 0))).astype(jnp.bfloat16)
    whw = jnp.concatenate([wproj.T, wgate.T], axis=1).astype(jnp.bfloat16)
    bhw = jnp.concatenate([bproj, bgate]).reshape(1, 2 * e_word).astype(jnp.float32)
    bconv2 = bconv.reshape(1, e_word).astype(jnp.float32)

    # ---- id prep: only int32 offset ids go to HBM/VMEM for the kernel ----
    BN = _round_up(max(8, min(block_n, _round_up(N, 8))), 8)
    Npad = _round_up(N, BN)                  # cdiv-style padding, sliced off below
    ids = char_ids.reshape(N, W).astype(jnp.int32)
    ids_pad = jnp.pad(ids, ((0, Npad - N), (pad, pad)), constant_values=-1)  # (Npad, W+k-1)
    # oid[j, n, w] = ids_pad[n, w+j] + j*Vp; the -1 sentinel stays strictly
    # negative (never offset into a valid row of another tap's block).
    shifted = jnp.stack([ids_pad[:, j:j + W] for j in range(k)], axis=0)     # (k, Npad, W)
    offs = (jnp.arange(k, dtype=jnp.int32) * Vp)[:, None, None]
    oid = jnp.where(shifted >= 0, shifted + offs, -1)

    out = pl.pallas_call(
        cnn_emb_kernel,
        out_shape=jax.ShapeDtypeStruct((Npad, e_word), out_dtype),
        grid_spec=pltpu.PrefetchScalarGridSpec(
            num_scalar_prefetch=0,
            grid=(Npad // BN,),
            in_specs=[
                pl.BlockSpec((k, BN, W), lambda i: (0, i, 0)),
                pl.BlockSpec((Kp, e_word), lambda i: (0, 0)),
                pl.BlockSpec((1, e_word), lambda i: (0, 0)),
                pl.BlockSpec((e_word, 2 * e_word), lambda i: (0, 0)),
                pl.BlockSpec((1, 2 * e_word), lambda i: (0, 0)),
            ],
            out_specs=pl.BlockSpec((BN, e_word), lambda i: (i, 0)),
        ),
        compiler_params=pltpu.CompilerParams(
            dimension_semantics=("parallel",),   # word tiles pipeline + megacore-shard
            vmem_limit_bytes=vmem_limit_bytes),
    )(oid, mtaps, bconv2, whw, bhw)

    return out[:N].reshape(S, B, e_word)


def reference(char_ids, char_vectors, wconv, bconv, wproj, bproj, wgate, bgate, *, k=5):
    """Plain-JAX f32 reference mirroring the PyTorch forward (NCL conv layout)."""
    S, B, W = char_ids.shape
    e_word = wconv.shape[0]
    N = S * B
    emb = char_vectors[char_ids.reshape(N, W)]              # (N, W, e_char)
    x = jnp.transpose(emb, (0, 2, 1))                       # (N, e_char, W)
    conv = jax.lax.conv_general_dilated(
        x, wconv, window_strides=(1,), padding=[((k - 1) // 2, (k - 1) // 2)],
        dimension_numbers=("NCH", "OIH", "NCH"))
    conv = conv + bconv[None, :, None]
    pooled = jnp.max(jax.nn.relu(conv), axis=-1)            # (N, e_word)
    proj = jax.nn.relu(pooled @ wproj.T + bproj)
    gate = jax.nn.sigmoid(pooled @ wgate.T + bgate)
    out = gate * proj + (1.0 - gate) * pooled
    return out.reshape(S, B, e_word)


if __name__ == "__main__":
    # (sentence_length, batch_size, max_word_length) of char indices.
    S, B, W = 5, 3, 8
    e_char = 64           # hardcoded in CNNEmbeddings.__init__
    embed_size = 128      # e_word of the CNN / Highway
    vocab = 30
    k = 5

    key = jax.random.PRNGKey(0)
    ks = jax.random.split(key, 8)
    char_ids = jax.random.randint(ks[0], (S, B, W), 0, vocab, dtype=jnp.int32)
    char_vectors = jax.random.normal(ks[1], (vocab, e_char), jnp.float32) * 0.1
    wconv = jax.random.normal(ks[2], (embed_size, e_char, k), jnp.float32) * 0.05
    bconv = jax.random.normal(ks[3], (embed_size,), jnp.float32) * 0.05
    wproj = jax.random.normal(ks[4], (embed_size, embed_size), jnp.float32) * 0.05
    bproj = jax.random.normal(ks[5], (embed_size,), jnp.float32) * 0.05
    wgate = jax.random.normal(ks[6], (embed_size, embed_size), jnp.float32) * 0.05
    bgate = jax.random.normal(ks[7], (embed_size,), jnp.float32) * 0.05

    # block_n=8 exercises a multi-block parallel grid with a padded remainder
    # tile at these tiny test shapes; real workloads use the default block_n=256
    # (sweep 512-1024 on v6e/v7x, keep <=512 on v5e).
    out = cnn_embeddings(char_ids, char_vectors, wconv, bconv,
                         wproj, bproj, wgate, bgate, k=k, block_n=8)
    out = jax.block_until_ready(out)

    ref = reference(char_ids, char_vectors, wconv, bconv,
                    wproj, bproj, wgate, bgate, k=k)
    assert out.shape == (S, B, embed_size)
    assert jnp.allclose(out.astype(jnp.float32), ref, atol=1e-2, rtol=1e-2), (
        "mismatch vs reference: max abs diff = "
        f"{float(jnp.max(jnp.abs(out.astype(jnp.float32) - ref)))}")

    # NOTE: self.dropout is constructed in __init__ but never applied in
    # forward, so no dropout is applied here either.
    print("KERNEL_OK")
</pallas_src>

<mosaic_0001>
module attributes {stable_mosaic.version = 11 : i64} {
  func.func @cnn_emb_kernel(%arg0: i32, %arg1: memref<5x8x8xi32, #tpu.memory_space<vmem>>, %arg2: memref<256x128xbf16, #tpu.memory_space<vmem>>, %arg3: memref<1x128xf32, #tpu.memory_space<vmem>>, %arg4: memref<128x256xbf16, #tpu.memory_space<vmem>>, %arg5: memref<1x256xf32, #tpu.memory_space<vmem>>, %arg6: memref<8x128xbf16, #tpu.memory_space<vmem>>) attributes {dimension_semantics = [#tpu.dimension_semantics<parallel>], iteration_bounds = array<i64: 2>, scalar_prefetch = 0 : i64, scratch_operands = 0 : i64, tpu.core_type = #tpu.core_type<tc>, window_params = [{transform_indices = @transform_0, window_bounds = array<i64: 5, 8, 8>}, {pipeline_mode = #tpu.pipeline_mode<synchronous>, transform_indices = @transform_1, window_bounds = array<i64: 256, 128>}, {pipeline_mode = #tpu.pipeline_mode<synchronous>, transform_indices = @transform_2, window_bounds = array<i64: 1, 128>}, {pipeline_mode = #tpu.pipeline_mode<synchronous>, transform_indices = @transform_3, window_bounds = array<i64: 128, 256>}, {pipeline_mode = #tpu.pipeline_mode<synchronous>, transform_indices = @transform_4, window_bounds = array<i64: 1, 256>}, {transform_indices = @transform_5, window_bounds = array<i64: 8, 128>}]} {
    %0 = tpu.iota {dimensions = array<i32: 2>} : vector<8x8x256xi32>
    %c0 = arith.constant 0 : index
    %c0_0 = arith.constant 0 : index
    %c0_1 = arith.constant 0 : index
    %1 = vector.load %arg1[%c0, %c0_0, %c0_1] : memref<5x8x8xi32, #tpu.memory_space<vmem>>, vector<1x8x8xi32>
    %2 = vector.shape_cast %1 : vector<1x8x8xi32> to vector<8x8xi32>
    %3 = vector.shape_cast %2 : vector<8x8xi32> to vector<8x8x1xi32>
    %4 = vector.broadcast %3 : vector<8x8x1xi32> to vector<8x8x256xi32>
    %5 = arith.cmpi eq, %4, %0 : vector<8x8x256xi32>
    %c1 = arith.constant 1 : index
    %c0_2 = arith.constant 0 : index
    %c0_3 = arith.constant 0 : index
    %6 = vector.load %arg1[%c1, %c0_2, %c0_3] : memref<5x8x8xi32, #tpu.memory_space<vmem>>, vector<1x8x8xi32>
    %7 = vector.shape_cast %6 : vector<1x8x8xi32> to vector<8x8xi32>
    %8 = vector.shape_cast %7 : vector<8x8xi32> to vector<8x8x1xi32>
    %9 = vector.broadcast %8 : vector<8x8x1xi32> to vector<8x8x256xi32>
    %10 = arith.cmpi eq, %9, %0 : vector<8x8x256xi32>
    %11 = arith.ori %5, %10 : vector<8x8x256xi1>
    %c2 = arith.constant 2 : index
    %c0_4 = arith.constant 0 : index
    %c0_5 = arith.constant 0 : index
    %12 = vector.load %arg1[%c2, %c0_4, %c0_5] : memref<5x8x8xi32, #tpu.memory_space<vmem>>, vector<1x8x8xi32>
    %13 = vector.shape_cast %12 : vector<1x8x8xi32> to vector<8x8xi32>
    %14 = vector.shape_cast %13 : vector<8x8xi32> to vector<8x8x1xi32>
    %15 = vector.broadcast %14 : vector<8x8x1xi32> to vector<8x8x256xi32>
    %16 = arith.cmpi eq, %15, %0 : vector<8x8x256xi32>
    %17 = arith.ori %11, %16 : vector<8x8x256xi1>
    %c3 = arith.constant 3 : index
    %c0_6 = arith.constant 0 : index
    %c0_7 = arith.constant 0 : index
    %18 = vector.load %arg1[%c3, %c0_6, %c0_7] : memref<5x8x8xi32, #tpu.memory_space<vmem>>, vector<1x8x8xi32>
    %19 = vector.shape_cast %18 : vector<1x8x8xi32> to vector<8x8xi32>
    %20 = vector.shape_cast %19 : vector<8x8xi32> to vector<8x8x1xi32>
    %21 = vector.broadcast %20 : vector<8x8x1xi32> to vector<8x8x256xi32>
    %22 = arith.cmpi eq, %21, %0 : vector<8x8x256xi32>
    %23 = arith.ori %17, %22 : vector<8x8x256xi1>
    %c4 = arith.constant 4 : index
    %c0_8 = arith.constant 0 : index
    %c0_9 = arith.constant 0 : index
    %24 = vector.load %arg1[%c4, %c0_8, %c0_9] : memref<5x8x8xi32, #tpu.memory_space<vmem>>, vector<1x8x8xi32>
    %25 = vector.shape_cast %24 : vector<1x8x8xi32> to vector<8x8xi32>
    %26 = vector.shape_cast %25 : vector<8x8xi32> to vector<8x8x1xi32>
    %27 = vector.broadcast %26 : vector<8x8x1xi32> to vector<8x8x256xi32>
    %28 = arith.cmpi eq, %27, %0 : vector<8x8x256xi32>
    %29 = arith.ori %23, %28 : vector<8x8x256xi1>
    %30 = arith.extui %29 : vector<8x8x256xi1> to vector<8x8x256xi32>
    %31 = arith.sitofp %30 : vector<8x8x256xi32> to vector<8x8x256xf32>
    %32 = arith.truncf %31 : vector<8x8x256xf32> to vector<8x8x256xbf16>
    %33 = vector.shape_cast %32 : vector<8x8x256xbf16> to vector<64x256xbf16>
    %c0_10 = arith.constant 0 : index
    %c0_11 = arith.constant 0 : index
    %34 = vector.load %arg2[%c0_10, %c0_11] : memref<256x128xbf16, #tpu.memory_space<vmem>>, vector<256x128xbf16>
    %cst = arith.constant dense<0.000000e+00> : vector<64x128xf32>
    %35 = tpu.matmul %33, %34, %cst {dimension_numbers = #tpu.dot_dimension_numbers<[1], [0], [0], [1], [0, 0, 1, 1], [], []>} : vector<64x256xbf16>, vector<256x128xbf16>, vector<64x128xf32> -> vector<64x128xf32>
    %36 = vector.shape_cast %35 : vector<64x128xf32> to vector<8x8x128xf32>
    %cst_12 = arith.constant dense<0xFF800000> : vector<8x128xf32>
    %37 = vector.multi_reduction <maximumf>, %36, %cst_12 [1] : vector<8x8x128xf32> to vector<8x128xf32>
    %c0_13 = arith.constant 0 : index
    %c0_14 = arith.constant 0 : index
    %38 = vector.load %arg3[%c0_13, %c0_14] : memref<1x128xf32, #tpu.memory_space<vmem>>, vector<1x128xf32>
    %39 = vector.broadcast %38 : vector<1x128xf32> to vector<8x128xf32>
    %40 = arith.addf %37, %39 : vector<8x128xf32>
    %cst_15 = arith.constant 0.000000e+00 : f32
    %41 = vector.broadcast %cst_15 : f32 to vector<8x128xf32>
    %42 = arith.maximumf %40, %41 : vector<8x128xf32>
    %43 = arith.truncf %42 : vector<8x128xf32> to vector<8x128xbf16>
    %c0_16 = arith.constant 0 : index
    %c0_17 = arith.constant 0 : index
    %44 = vector.load %arg4[%c0_16, %c0_17] : memref<128x256xbf16, #tpu.memory_space<vmem>>, vector<128x256xbf16>
    %cst_18 = arith.constant dense<0.000000e+00> : vector<8x256xf32>
    %45 = tpu.matmul %43, %44, %cst_18 {dimension_numbers = #tpu.dot_dimension_numbers<[1], [0], [0], [1], [0, 0, 1, 1], [], []>} : vector<8x128xbf16>, vector<128x256xbf16>, vector<8x256xf32> -> vector<8x256xf32>
    %c0_19 = arith.constant 0 : index
    %c0_20 = arith.constant 0 : index
    %46 = vector.load %arg5[%c0_19, %c0_20] : memref<1x256xf32, #tpu.memory_space<vmem>>, vector<1x256xf32>
    %47 = vector.broadcast %46 : vector<1x256xf32> to vector<8x256xf32>
    %48 = arith.addf %45, %47 : vector<8x256xf32>
    %49 = vector.extract_strided_slice %48 {offsets = [0, 0], sizes = [8, 128], strides = [1, 1]} : vector<8x256xf32> to vector<8x128xf32>
    %cst_21 = arith.constant 0.000000e+00 : f32
    %50 = vector.broadcast %cst_21 : f32 to vector<8x128xf32>
    %51 = arith.maximumf %49, %50 : vector<8x128xf32>
    %52 = vector.extract_strided_slice %48 {offsets = [0, 128], sizes = [8, 128], strides = [1, 1]} : vector<8x256xf32> to vector<8x128xf32>
    %cst_22 = arith.constant 0.000000e+00 : f32
    %53 = vector.broadcast %cst_22 : f32 to vector<8x128xf32>
    %54 = arith.subf %53, %52 : vector<8x128xf32>
    %55 = math.exp %54 : vector<8x128xf32>
    %cst_23 = arith.constant 1.000000e+00 : f32
    %56 = vector.broadcast %cst_23 : f32 to vector<8x128xf32>
    %57 = arith.addf %56, %55 : vector<8x128xf32>
    %58 = tpu.reciprocal %57 {approx = true} : vector<8x128xf32> -> vector<8x128xf32>
    %59 = arith.subf %51, %42 : vector<8x128xf32>
    %60 = arith.mulf %58, %59 : vector<8x128xf32>
    %61 = arith.addf %42, %60 : vector<8x128xf32>
    %62 = arith.truncf %61 : vector<8x128xf32> to vector<8x128xbf16>
    %c0_24 = arith.constant 0 : index
    %c0_25 = arith.constant 0 : index
    %63 = vector.load %arg6[%c0_24, %c0_25] : memref<8x128xbf16, #tpu.memory_space<vmem>>, vector<8x128xbf16>
    tpu.vector_store %arg6[%c0_24, %c0_25], %62 {strides = array<i32>} : memref<8x128xbf16, #tpu.memory_space<vmem>>, vector<8x128xbf16>,
    return
  }
  func.func @transform_0(%arg0: i32) -> (i32, i32, i32) {
    %c0_i32 = arith.constant 0 : i32
    %c0_i32_0 = arith.constant 0 : i32
    %c0_i32_1 = arith.constant 0 : i32
    return %c0_i32, %arg0, %c0_i32_0 : i32, i32, i32
  }
  func.func @transform_1(%arg0: i32) -> (i32, i32) {
    %c0_i32 = arith.constant 0 : i32
    %c0_i32_0 = arith.constant 0 : i32
    %c0_i32_1 = arith.constant 0 : i32
    return %c0_i32, %c0_i32_0 : i32, i32
  }
  func.func @transform_2(%arg0: i32) -> (i32, i32) {
    %c0_i32 = arith.constant 0 : i32
    %c0_i32_0 = arith.constant 0 : i32
    %c0_i32_1 = arith.constant 0 : i32
    return %c0_i32, %c0_i32_0 : i32, i32
  }
  func.func @transform_3(%arg0: i32) -> (i32, i32) {
    %c0_i32 = arith.constant 0 : i32
    %c0_i32_0 = arith.constant 0 : i32
    %c0_i32_1 = arith.constant 0 : i32
    return %c0_i32, %c0_i32_0 : i32, i32
  }
  func.func @transform_4(%arg0: i32) -> (i32, i32) {
    %c0_i32 = arith.constant 0 : i32
    %c0_i32_0 = arith.constant 0 : i32
    %c0_i32_1 = arith.constant 0 : i32
    return %c0_i32, %c0_i32_0 : i32, i32
  }
  func.func @transform_5(%arg0: i32) -> (i32, i32) {
    %c0_i32 = arith.constant 0 : i32
    %c0_i32_0 = arith.constant 0 : i32
    return %arg0, %c0_i32 : i32, i32
  }
}

</mosaic_0001>

<llo_original>
// kernel: tpu_custom_call.1
$region0: #{tpu_custom_call.1}
  #allocation0 [shape = 'u32[]', space=smem, size = 0x4, offset = 0x4, fixed_abs, tag = 'smem constant byte address 0x4 - core index']
  #allocation1 [shape = 'u32[144,128]{1,0:T(1,128)}', space=vmem, size = 0x12000, scoped, tag = 'internal scratch']
  %s0 = inlined_call_operand.vmem [shape: s32[5,16,8], index: 0, kind: input, shape index: {}]
  %s1 = inlined_call_operand.hbm [shape: bf16[256,128], index: 1, kind: input, shape index: {}]
  %s2 = inlined_call_operand.vmem [shape: f32[1,128], index: 2, kind: input, shape index: {}]
  %s3 = inlined_call_operand.vmem [shape: bf16[128,256], index: 3, kind: input, shape index: {}]
  %s4 = inlined_call_operand.vmem [shape: f32[1,256], index: 4, kind: input, shape index: {}]
  %s5 = inlined_call_operand.hbm [shape: bf16[16,128], index: 5, kind: output, shape index: {}]
  %s6 = sld [smem:[#allocation0]]
  $region95: #{tpu_custom_call.1} parent=0
    _
  %s8 = ssub.s32 1, %s6
  %s9 = scalar_select 0, %s8, %s6
  $region1: #{tpu_custom_call.1} parent=0
    #allocation2 [shape = 'u8[40960]{0}', space=vmem, size = 0xa000, scoped, tag = 'input window, operand 0']
    #allocation3 [shape = 'u8[65536]{0}', space=vmem, size = 0x10000, scoped, tag = 'input window, operand 1, single buffered']
    #allocation4 [shape = 's32[2]{0}', space=sflag, size = 0x8, scoped, tag = 'scoped memory for tpu_custom_call.1']
    #allocation5 [shape = 's32[2]{0}', space=sflag, size = 0x8, scoped, tag = 'scoped memory for tpu_custom_call.1']
    #allocation6 [shape = 'u8[4096]{0}', space=vmem, size = 0x1000, scoped, tag = 'output window, operand 0']
    %10 = vsyncpa [#allocation4], 0
    %11 = vsyncpa [#allocation5], 0
    %s12 = scalar_lea.sflag [#allocation5], 1
    %13 = vsyncpa %s12, 0
    loop: start=0, step=1, limit=4
    $region2: #{tpu_custom_call.1} parent=1 // loop_pre_header
      _
    $region3: #{tpu_custom_call.1} parent=1 // loop_header
      %s15 = sphi 0, %s19
      %p16 = scmp.ge.s32.totalorder %s15, 4
      %s25 = sphi 0, %s27
      %s28 = sphi 0, %s25
      %s29 = sphi 0, %s28
      %s45 = sphi 0, %s29
      %s49 = sphi 0, %s49
      %s51 = sphi 0, %s49
      %s52 = sphi 0, %s51
      %s66 = sphi 0, %s52
      %s70 = sphi 0, %s70
      %s72 = sphi 0, %s70
      %s73 = sphi 0, %s72
      %s87 = sphi 0, %s73
      %s91 = sphi 0, %s91
      %s93 = sphi 0, %s91
      %s94 = sphi 0, %s93
      %s108 = sphi 0, %s94
      %s112 = sphi 0, %s112
      %s114 = sphi 0, %s112
      %s115 = sphi 0, %s114
      %s129 = sphi 0, %s115
      %s135 = sphi 0, %s137
      %s138 = sphi 0, %s135
      %s139 = sphi 0, %s138
      %s155 = sphi 0, %s139
    $region4: #{tpu_custom_call.1} parent=1 // loop_header_branch
      %18 = sbr.rel (%p16) target = $region8
    $region5: #{tpu_custom_call.1} parent=1 // loop_body
      %s20 = ssub.s32 %s15, 1
      %s21 = ssub.s32 %s15, 2
      %s22 = sadd.s32 %s15, 1
      %s23 = ssub.s32 %s15, %s22
      %p24 = scmp.eq.s32.totalorder %s23, 0
      %s26 = sadd.s32 %s25, 1
      %s27 = scalar_select %p24, %s25, %s26
      %p30 = pneg %p24
      %p31 = scmp.eq.s32.totalorder %s15, 1
      %p32 = por %p30, %p31
      %p33 = scmp.ne.s32.totalorder %s25, %s28
      %p34 = scmp.eq.s32.totalorder %s15, 0
      %p35 = por %p33, %p34
      %p36 = scmp.ne.s32.totalorder %s25, %s28
      %p37 = scmp.eq.s32.totalorder %s20, 1
      %p38 = por %p36, %p37
      %p39 = scmp.ne.s32.totalorder %s28, %s29
      %p40 = scmp.eq.s32.totalorder %s20, 0
      %p41 = por %p39, %p40
      %p42 = scmp.ne.s32.totalorder %s28, %s29
      %p43 = scmp.eq.s32.totalorder %s21, 1
      %p44 = por %p42, %p43
      %p46 = scmp.ne.s32.totalorder %s29, %s45
      %p47 = scmp.eq.s32.totalorder %s21, 0
      %p48 = por %p46, %p47
      %s50 = sadd.s32 %s49, 1
      %p53 = scmp.eq.s32.totalorder %s15, 1
      %p54 = scmp.ne.s32.totalorder %s49, %s51
      %p55 = scmp.eq.s32.totalorder %s15, 0
      %p56 = por %p54, %p55
      %p57 = scmp.ne.s32.totalorder %s49, %s51
      %p58 = scmp.eq.s32.totalorder %s20, 1
      %p59 = por %p57, %p58
      %p60 = scmp.ne.s32.totalorder %s51, %s52
      %p61 = scmp.eq.s32.totalorder %s20, 0
      %p62 = por %p60, %p61
      %p63 = scmp.ne.s32.totalorder %s51, %s52
      %p64 = scmp.eq.s32.totalorder %s21, 1
      %p65 = por %p63, %p64
      %p67 = scmp.ne.s32.totalorder %s52, %s66
      %p68 = scmp.eq.s32.totalorder %s21, 0
      %p69 = por %p67, %p68
      %s71 = sadd.s32 %s70, 1
      %p74 = scmp.eq.s32.totalorder %s15, 1
      %p75 = scmp.ne.s32.totalorder %s70, %s72
      %p76 = scmp.eq.s32.totalorder %s15, 0
      %p77 = por %p75, %p76
      %p78 = scmp.ne.s32.totalorder %s70, %s72
      %p79 = scmp.eq.s32.totalorder %s20, 1
      %p80 = por %p78, %p79
      %p81 = scmp.ne.s32.totalorder %s72, %s73
      %p82 = scmp.eq.s32.totalorder %s20, 0
      %p83 = por %p81, %p82
      %p84 = scmp.ne.s32.totalorder %s72, %s73
      %p85 = scmp.eq.s32.totalorder %s21, 1
      %p86 = por %p84, %p85
      %p88 = scmp.ne.s32.totalorder %s73, %s87
      %p89 = scmp.eq.s32.totalorder %s21, 0
      %p90 = por %p88, %p89
      %s92 = sadd.s32 %s91, 1
      %p95 = scmp.eq.s32.totalorder %s15, 1
      %p96 = scmp.ne.s32.totalorder %s91, %s93
      %p97 = scmp.eq.s32.totalorder %s15, 0
      %p98 = por %p96, %p97
      %p99 = scmp.ne.s32.totalorder %s91, %s93
      %p100 = scmp.eq.s32.totalorder %s20, 1
      %p101 = por %p99, %p100
      %p102 = scmp.ne.s32.totalorder %s93, %s94
      %p103 = scmp.eq.s32.totalorder %s20, 0
      %p104 = por %p102, %p103
      %p105 = scmp.ne.s32.totalorder %s93, %s94
      %p106 = scmp.eq.s32.totalorder %s21, 1
      %p107 = por %p105, %p106
      %p109 = scmp.ne.s32.totalorder %s94, %s108
      %p110 = scmp.eq.s32.totalorder %s21, 0
      %p111 = por %p109, %p110
      %s113 = sadd.s32 %s112, 1
      %p116 = scmp.eq.s32.totalorder %s15, 1
      %p117 = scmp.ne.s32.totalorder %s112, %s114
      %p118 = scmp.eq.s32.totalorder %s15, 0
      %p119 = por %p117, %p118
      %p120 = scmp.ne.s32.totalorder %s112, %s114
      %p121 = scmp.eq.s32.totalorder %s20, 1
      %p122 = por %p120, %p121
      %p123 = scmp.ne.s32.totalorder %s114, %s115
      %p124 = scmp.eq.s32.totalorder %s20, 0
      %p125 = por %p123, %p124
      %p126 = scmp.ne.s32.totalorder %s114, %s115
      %p127 = scmp.eq.s32.totalorder %s21, 1
      %p128 = por %p126, %p127
      %p130 = scmp.ne.s32.totalorder %s115, %s129
      %p131 = scmp.eq.s32.totalorder %s21, 0
      %p132 = por %p130, %p131
      %s133 = ssub.s32 %s15, %s22
      %p134 = scmp.eq.s32.totalorder %s133, 0
      %s136 = sadd.s32 %s135, 1
      %s137 = scalar_select %p134, %s135, %s136
      %p140 = pneg %p134
      %p141 = scmp.eq.s32.totalorder %s15, 1
      %p142 = por %p140, %p141
      %p143 = scmp.ne.s32.totalorder %s135, %s138
      %p144 = scmp.eq.s32.totalorder %s15, 0
      %p145 = por %p143, %p144
      %p146 = scmp.ne.s32.totalorder %s135, %s138
      %p147 = scmp.eq.s32.totalorder %s20, 1
      %p148 = por %p146, %p147
      %p149 = scmp.ne.s32.totalorder %s138, %s139
      %p150 = scmp.eq.s32.totalorder %s20, 0
      %p151 = por %p149, %p150
      %p152 = scmp.ne.s32.totalorder %s138, %s139
      %p153 = scmp.eq.s32.totalorder %s21, 1
      %p154 = por %p152, %p153
      %p156 = scmp.ne.s32.totalorder %s139, %s155
      %p157 = scmp.eq.s32.totalorder %s21, 0
      %p158 = por %p156, %p157
      %p159 = scmp.le.s32.totalorder 1, %s15
      %p160 = scmp.lt.s32.totalorder %s15, 3
      %p161 = pnand %p159, %p160
      %p162 = pneg %p161
      // Predicated region
      $region9: #{tpu_custom_call.1} parent=5 // pred_check
        _
      $region10: #{tpu_custom_call.1} parent=5 // pred_check_branch
        %164 = sbr.rel (%p161) target = $region12
      $region11: #{tpu_custom_call.1} parent=5 // pred_region
        %s165 = ssub.s32 %s15, 1
        // Predicated region
        $region13: #{tpu_custom_call.1} parent=11 // pred_check
          %p166 = pneg %p62
        $region14: #{tpu_custom_call.1} parent=11 // pred_check_branch
          %168 = sbr.rel (%p166) target = $region16
        $region15: #{tpu_custom_call.1} parent=11 // pred_region
          %s170 = ssub.s32 2048, 2048
          %171 = vsyncadd [#allocation4], %s170
          %s172 = sshll.u32 [#allocation3], 4
          %s173 = int_to_ptr.vmem [resolvable:$true] %s172
          %178 = dma.hbm_to_vmem [thread:$0]  %s1, 2048, %s173, [#allocation4], 64, 64, 4
        $region16: #{tpu_custom_call.1} parent=11 // pred_fallthru
          _
        // Predicated region
        $region17: #{tpu_custom_call.1} parent=11 // pred_check
          %p179 = pneg %p83
        $region18: #{tpu_custom_call.1} parent=11 // pred_check_branch
          %181 = sbr.rel (%p179) target = $region20
        $region19: #{tpu_custom_call.1} parent=11 // pred_region
          _
        $region20: #{tpu_custom_call.1} parent=11 // pred_fallthru
          _
        // Predicated region
        $region21: #{tpu_custom_call.1} parent=11 // pred_check
          %p182 = pneg %p104
        $region22: #{tpu_custom_call.1} parent=11 // pred_check_branch
          %184 = sbr.rel (%p182) target = $region24
        $region23: #{tpu_custom_call.1} parent=11 // pred_region
          _
        $region24: #{tpu_custom_call.1} parent=11 // pred_fallthru
          _
        // Predicated region
        $region25: #{tpu_custom_call.1} parent=11 // pred_check
          %p185 = pneg %p125
        $region26: #{tpu_custom_call.1} parent=11 // pred_check_branch
          %187 = sbr.rel (%p185) target = $region28
        $region27: #{tpu_custom_call.1} parent=11 // pred_region
          _
        $region28: #{tpu_custom_call.1} parent=11 // pred_fallthru
          _
      $region12: #{tpu_custom_call.1} parent=5 // pred_fallthru
        _
      %p188 = scmp.lt.s32.totalorder %s15, 2
      // Predicated region
      $region29: #{tpu_custom_call.1} parent=5 // pred_check
        %p189 = pneg %p188
      $region30: #{tpu_custom_call.1} parent=5 // pred_check_branch
        %191 = sbr.rel (%p189) target = $region32
      $region31: #{tpu_custom_call.1} parent=5 // pred_region
        // Predicated region
        $region33: #{tpu_custom_call.1} parent=31 // pred_check
          %p192 = pneg %p35
        $region34: #{tpu_custom_call.1} parent=31 // pred_check_branch
          %194 = sbr.rel (%p192) target = $region36
        $region35: #{tpu_custom_call.1} parent=31 // pred_region
          %s195 = sand.u32 %s25, 1
          %s196 = sand.u32 %s25, 1
          %s197 = smul.addr %s196, 40
          %s198 = scalar_lea.vmem [#allocation2], %s197
          %s199 = smul.addr %s15, 8
          %s200 = scalar_lea.vmem %s0, %s199
          // Predicated region
          $region37: #{tpu_custom_call.1} parent=35 // pred_check
            _
          $region38: #{tpu_custom_call.1} parent=35 // pred_check_branch
            %202 = sbr.rel (0) target = $region40
          $region39: #{tpu_custom_call.1} parent=35 // pred_region
            // Predicated region
            $region41: #{tpu_custom_call.1} parent=39 // pred_check
              _
            $region42: #{tpu_custom_call.1} parent=39 // pred_check_branch
              %204 = sbr.rel (0) target = $region44
            $region43: #{tpu_custom_call.1} parent=39 // pred_region
              // Predicated region
              $region56: #{tpu_custom_call.1} parent=43 // pred_check
                _
              $region57: #{tpu_custom_call.1} parent=43 // pred_check_branch
                %227 = sbr.rel (0) target = $region59
              $region58: #{tpu_custom_call.1} parent=43 // pred_region
                loop: start=0, step=1, limit=1
                $region60: #{tpu_custom_call.1} parent=58 // loop_pre_header
                  _
                $region61: #{tpu_custom_call.1} parent=58 // loop_header
                  %s229 = sphi 0, %s233
                  %p230 = scmp.ge.s32.totalorder %s229, 1
                  %s234 = sphi %s200, %s200
                  %s235 = sphi %s198, %s198
                $region62: #{tpu_custom_call.1} parent=58 // loop_header_branch
                  %232 = sbr.rel (%p230) target = $region66
                $region63: #{tpu_custom_call.1} parent=58 // loop_body
                  %v236 = vld [vmem:[%s234] sm:$0xff]
                  %237 = vst [vmem:[%s235] sm:$0xff] %v236
                  %v238 = vld [vmem:[%s234 + $0x10] sm:$0xff]
                  %239 = vst [vmem:[%s235 + $0x8] sm:$0xff] %v238
                  %v240 = vld [vmem:[%s234 + $0x20] sm:$0xff]
                  %241 = vst [vmem:[%s235 + $0x10] sm:$0xff] %v240
                  %v242 = vld [vmem:[%s234 + $0x30] sm:$0xff]
                  %243 = vst [vmem:[%s235 + $0x18] sm:$0xff] %v242
                  %v244 = vld [vmem:[%s234 + $0x40] sm:$0xff]
                  %245 = vst [vmem:[%s235 + $0x20] sm:$0xff] %v244
                $region64: #{tpu_custom_call.1} parent=58 // loop_footer
                  %s233 = sadd.s32 1, %s229
                $region65: #{tpu_custom_call.1} parent=58 // loop_footer_branch
                  %228 = sbr.rel target = $region61
                $region66: #{tpu_custom_call.1} parent=58 // loop_exit
                  _
              $region59: #{tpu_custom_call.1} parent=43 // pred_fallthru
                _
              // Predicated region
              $region67: #{tpu_custom_call.1} parent=43 // pred_check
                _
              $region68: #{tpu_custom_call.1} parent=43 // pred_check_branch
                %247 = sbr.rel target = $region70
              $region69: #{tpu_custom_call.1} parent=43 // pred_region
                _
              $region70: #{tpu_custom_call.1} parent=43 // pred_fallthru
                _
            $region44: #{tpu_custom_call.1} parent=39 // pred_fallthru
              _
            // Predicated region
            $region45: #{tpu_custom_call.1} parent=39 // pred_check
              _
            $region46: #{tpu_custom_call.1} parent=39 // pred_check_branch
              %206 = sbr.rel target = $region48
            $region47: #{tpu_custom_call.1} parent=39 // pred_region
              loop: start=0, step=1, limit=1
              $region49: #{tpu_custom_call.1} parent=47 // loop_pre_header
                _
              $region50: #{tpu_custom_call.1} parent=47 // loop_header
                %s209 = sphi 0, %s213
                %p210 = scmp.ge.s32.totalorder %s209, 1
                %s214 = sphi %s200, %s200
                %s215 = sphi %s198, %s198
              $region51: #{tpu_custom_call.1} parent=47 // loop_header_branch
                %212 = sbr.rel (%p210) target = $region55
              $region52: #{tpu_custom_call.1} parent=47 // loop_body
                %v216 = vld [vmem:[%s214] sm:$0xff]
                %217 = vst [vmem:[%s215] sm:$0xff] %v216
                %v218 = vld [vmem:[%s214 + $0x10] sm:$0xff]
                %219 = vst [vmem:[%s215 + $0x8] sm:$0xff] %v218
                %v220 = vld [vmem:[%s214 + $0x20] sm:$0xff]
                %221 = vst [vmem:[%s215 + $0x10] sm:$0xff] %v220
                %v222 = vld [vmem:[%s214 + $0x30] sm:$0xff]
                %223 = vst [vmem:[%s215 + $0x18] sm:$0xff] %v222
                %v224 = vld [vmem:[%s214 + $0x40] sm:$0xff]
                %225 = vst [vmem:[%s215 + $0x20] sm:$0xff] %v224
              $region53: #{tpu_custom_call.1} parent=47 // loop_footer
                %s213 = sadd.s32 1, %s209
              $region54: #{tpu_custom_call.1} parent=47 // loop_footer_branch
                %208 = sbr.rel target = $region50
              $region55: #{tpu_custom_call.1} parent=47 // loop_exit
                _
            $region48: #{tpu_custom_call.1} parent=39 // pred_fallthru
              _
          $region40: #{tpu_custom_call.1} parent=35 // pred_fallthru
            _
          %248 = vnop
        $region36: #{tpu_custom_call.1} parent=31 // pred_fallthru
          _
      $region32: #{tpu_custom_call.1} parent=5 // pred_fallthru
        _
      %p249 = scmp.le.s32.totalorder 1, %s15
      %p250 = scmp.lt.s32.totalorder %s15, 3
      %p251 = pnand %p249, %p250
      %p252 = pneg %p251
      // Predicated region
      $region71: #{tpu_custom_call.1} parent=5 // pred_check
        _
      $region72: #{tpu_custom_call.1} parent=5 // pred_check_branch
        %254 = sbr.rel (%p251) target = $region74
      $region73: #{tpu_custom_call.1} parent=5 // pred_region
        %s255 = ssub.s32 %s15, 1
        %s256 = sand.u32 %s28, 1
        %s257 = sand.u32 %s28, 1
        %s258 = smul.addr %s257, 40
        %s259 = scalar_lea.vmem [#allocation2], %s258
        // Predicated region
        $region75: #{tpu_custom_call.1} parent=73 // pred_check
          %p260 = pneg %p41
        $region76: #{tpu_custom_call.1} parent=73 // pred_check_branch
          %262 = sbr.rel (%p260) target = $region78
        $region77: #{tpu_custom_call.1} parent=73 // pred_region
          _
        $region78: #{tpu_custom_call.1} parent=73 // pred_fallthru
          _
        // Predicated region
        $region79: #{tpu_custom_call.1} parent=73 // pred_check
          %p263 = pneg %p62
        $region80: #{tpu_custom_call.1} parent=73 // pred_check_branch
          %265 = sbr.rel (%p263) target = $region82
        $region81: #{tpu_custom_call.1} parent=73 // pred_region
          %266 = dma.done [#allocation4], 2048
        $region82: #{tpu_custom_call.1} parent=73 // pred_fallthru
          _
        %s267 = sand.u32 %s28, 1
        %s268 = sand.u32 %s28, 1
        %s269 = smul.addr %s268, 40
        %s270 = scalar_lea.vmem [#allocation2], %s269
        %p271 = pneg %p41
        %p272 = pneg %p38
        %p273 = pneg %p62
        %p274 = pneg %p59
        %p275 = pneg %p83
        %p276 = pneg %p80
        %p277 = pneg %p104
        %p278 = pneg %p101
        %p279 = pneg %p125
        %p280 = pneg %p122
        %p281 = pneg %p151
        %p282 = pneg %p148
        %s283 = sand.u32 %s138, 1
        %s284 = scalar_lea.sflag [#allocation5], %s283
        %s285 = sand.u32 %s138, 1
        %s286 = smul.addr %s285, 4
        %s287 = scalar_lea.vmem [#allocation6], %s286
        %v289 = vlaneseq
        %v290 = vand.u32 %v289, 127
        %v291 = vadd.s32 %v290, 128
        %v292 = vld [vmem:[%s259] sm:$0xff]
        %v293 = vlaneseq
        %v294 = vshrl.u32 %v293, 7
        %v295 = vsub.s32 0, %v294
        %v296 = vrot.slane %v292, %v295
        %298 = vbcast.lane.b32.xlu0 %v296, 256
        %v299 = vpop.permute.xlu0 %298
        %v300 = vlaneseq
        %v301 = vshrl.u32 %v300, 7
        %v302 = vsub.s32 1, %v301
        %v303 = vrot.slane %v292, %v302
        %305 = vbcast.lane.b32.xlu0 %v303, 256
        %v306 = vpop.permute.xlu0 %305
        %v307 = vlaneseq
        %v308 = vshrl.u32 %v307, 7
        %v309 = vsub.s32 2, %v308
        %v310 = vrot.slane %v292, %v309
        %312 = vbcast.lane.b32.xlu0 %v310, 256
        %v313 = vpop.permute.xlu0 %312
        %v314 = vlaneseq
        %v315 = vshrl.u32 %v314, 7
        %v316 = vsub.s32 3, %v315
        %v317 = vrot.slane %v292, %v316
        %319 = vbcast.lane.b32.xlu0 %v317, 256
        %v320 = vpop.permute.xlu0 %319
        %v321 = vlaneseq
        %v322 = vshrl.u32 %v321, 7
        %v323 = vsub.s32 4, %v322
        %v324 = vrot.slane %v292, %v323
        %326 = vbcast.lane.b32.xlu0 %v324, 256
        %v327 = vpop.permute.xlu0 %326
        %v328 = vlaneseq
        %v329 = vshrl.u32 %v328, 7
        %v330 = vsub.s32 5, %v329
        %v331 = vrot.slane %v292, %v330
        %333 = vbcast.lane.b32.xlu0 %v331, 256
        %v334 = vpop.permute.xlu0 %333
        %v335 = vlaneseq
        %v336 = vshrl.u32 %v335, 7
        %v337 = vsub.s32 6, %v336
        %v338 = vrot.slane %v292, %v337
        %340 = vbcast.lane.b32.xlu0 %v338, 256
        %v341 = vpop.permute.xlu0 %340
        %v342 = vlaneseq
        %v343 = vshrl.u32 %v342, 7
        %v344 = vsub.s32 7, %v343
        %v345 = vrot.slane %v292, %v344
        %347 = vbcast.lane.b32.xlu0 %v345, 256
        %v348 = vpop.permute.xlu0 %347
        %vm349 = vcmp.eq.s32.totalorder %v299, %v290
        %vm350 = vcmp.eq.s32.totalorder %v299, %v291
        %vm351 = vcmp.eq.s32.totalorder %v306, %v290
        %vm352 = vcmp.eq.s32.totalorder %v306, %v291
        %vm353 = vcmp.eq.s32.totalorder %v313, %v290
        %vm354 = vcmp.eq.s32.totalorder %v313, %v291
        %vm355 = vcmp.eq.s32.totalorder %v320, %v290
        %vm356 = vcmp.eq.s32.totalorder %v320, %v291
        %vm357 = vcmp.eq.s32.totalorder %v327, %v290
        %vm358 = vcmp.eq.s32.totalorder %v327, %v291
        %vm359 = vcmp.eq.s32.totalorder %v334, %v290
        %vm360 = vcmp.eq.s32.totalorder %v334, %v291
        %vm361 = vcmp.eq.s32.totalorder %v341, %v290
        %vm362 = vcmp.eq.s32.totalorder %v341, %v291
        %vm363 = vcmp.eq.s32.totalorder %v348, %v290
        %vm364 = vcmp.eq.s32.totalorder %v348, %v291
        %s365 = scalar_lea.vmem %s259, 8 [#allocation2]
        %v366 = vld [vmem:[%s365] sm:$0xff]
        %v367 = vlaneseq
        %v368 = vshrl.u32 %v367, 7
        %v369 = vsub.s32 0, %v368
        %v370 = vrot.slane %v366, %v369
        %372 = vbcast.lane.b32.xlu0 %v370, 256
        %v373 = vpop.permute.xlu0 %372
        %v374 = vlaneseq
        %v375 = vshrl.u32 %v374, 7
        %v376 = vsub.s32 1, %v375
        %v377 = vrot.slane %v366, %v376
        %379 = vbcast.lane.b32.xlu0 %v377, 256
        %v380 = vpop.permute.xlu0 %379
        %v381 = vlaneseq
        %v382 = vshrl.u32 %v381, 7
        %v383 = vsub.s32 2, %v382
        %v384 = vrot.slane %v366, %v383
        %386 = vbcast.lane.b32.xlu0 %v384, 256
        %v387 = vpop.permute.xlu0 %386
        %v388 = vlaneseq
        %v389 = vshrl.u32 %v388, 7
        %v390 = vsub.s32 3, %v389
        %v391 = vrot.slane %v366, %v390
        %393 = vbcast.lane.b32.xlu0 %v391, 256
        %v394 = vpop.permute.xlu0 %393
        %v395 = vlaneseq
        %v396 = vshrl.u32 %v395, 7
        %v397 = vsub.s32 4, %v396
        %v398 = vrot.slane %v366, %v397
        %400 = vbcast.lane.b32.xlu0 %v398, 256
        %v401 = vpop.permute.xlu0 %400
        %v402 = vlaneseq
        %v403 = vshrl.u32 %v402, 7
        %v404 = vsub.s32 5, %v403
        %v405 = vrot.slane %v366, %v404
        %407 = vbcast.lane.b32.xlu0 %v405, 256
        %v408 = vpop.permute.xlu0 %407
        %v409 = vlaneseq
        %v410 = vshrl.u32 %v409, 7
        %v411 = vsub.s32 6, %v410
        %v412 = vrot.slane %v366, %v411
        %414 = vbcast.lane.b32.xlu0 %v412, 256
        %v415 = vpop.permute.xlu0 %414
        %v416 = vlaneseq
        %v417 = vshrl.u32 %v416, 7
        %v418 = vsub.s32 7, %v417
        %v419 = vrot.slane %v366, %v418
        %421 = vbcast.lane.b32.xlu0 %v419, 256
        %v422 = vpop.permute.xlu0 %421
        %vm423 = vcmp.eq.s32.totalorder %v373, %v290
        %vm424 = vcmp.eq.s32.totalorder %v373, %v291
        %vm425 = vcmp.eq.s32.totalorder %v380, %v290
        %vm426 = vcmp.eq.s32.totalorder %v380, %v291
        %vm427 = vcmp.eq.s32.totalorder %v387, %v290
        %vm428 = vcmp.eq.s32.totalorder %v387, %v291
        %vm429 = vcmp.eq.s32.totalorder %v394, %v290
        %vm430 = vcmp.eq.s32.totalorder %v394, %v291
        %vm431 = vcmp.eq.s32.totalorder %v401, %v290
        %vm432 = vcmp.eq.s32.totalorder %v401, %v291
        %vm433 = vcmp.eq.s32.totalorder %v408, %v290
        %vm434 = vcmp.eq.s32.totalorder %v408, %v291
        %vm435 = vcmp.eq.s32.totalorder %v415, %v290
        %vm436 = vcmp.eq.s32.totalorder %v415, %v291
        %vm437 = vcmp.eq.s32.totalorder %v422, %v290
        %vm438 = vcmp.eq.s32.totalorder %v422, %v291
        %vm439 = vmor %vm349, %vm423
        %vm440 = vmor %vm350, %vm424
        %vm441 = vmor %vm351, %vm425
        %vm442 = vmor %vm352, %vm426
        %vm443 = vmor %vm353, %vm427
        %vm444 = vmor %vm354, %vm428
        %vm445 = vmor %vm355, %vm429
        %vm446 = vmor %vm356, %vm430
        %vm447 = vmor %vm357, %vm431
        %vm448 = vmor %vm358, %vm432
        %vm449 = vmor %vm359, %vm433
        %vm450 = vmor %vm360, %vm434
        %vm451 = vmor %vm361, %vm435
        %vm452 = vmor %vm362, %vm436
        %vm453 = vmor %vm363, %vm437
        %vm454 = vmor %vm364, %vm438
        %s455 = scalar_lea.vmem %s259, 16 [#allocation2]
        %v456 = vld [vmem:[%s455] sm:$0xff]
        %v457 = vlaneseq
        %v458 = vshrl.u32 %v457, 7
        %v459 = vsub.s32 0, %v458
        %v460 = vrot.slane %v456, %v459
        %462 = vbcast.lane.b32.xlu0 %v460, 256
        %v463 = vpop.permute.xlu0 %462
        %v464 = vlaneseq
        %v465 = vshrl.u32 %v464, 7
        %v466 = vsub.s32 1, %v465
        %v467 = vrot.slane %v456, %v466
        %469 = vbcast.lane.b32.xlu0 %v467, 256
        %v470 = vpop.permute.xlu0 %469
        %v471 = vlaneseq
        %v472 = vshrl.u32 %v471, 7
        %v473 = vsub.s32 2, %v472
        %v474 = vrot.slane %v456, %v473
        %476 = vbcast.lane.b32.xlu0 %v474, 256
        %v477 = vpop.permute.xlu0 %476
        %v478 = vlaneseq
        %v479 = vshrl.u32 %v478, 7
        %v480 = vsub.s32 3, %v479
        %v481 = vrot.slane %v456, %v480
        %483 = vbcast.lane.b32.xlu0 %v481, 256
        %v484 = vpop.permute.xlu0 %483
        %v485 = vlaneseq
        %v486 = vshrl.u32 %v485, 7
        %v487 = vsub.s32 4, %v486
        %v488 = vrot.slane %v456, %v487
        %490 = vbcast.lane.b32.xlu0 %v488, 256
        %v491 = vpop.permute.xlu0 %490
        %v492 = vlaneseq
        %v493 = vshrl.u32 %v492, 7
        %v494 = vsub.s32 5, %v493
        %v495 = vrot.slane %v456, %v494
        %497 = vbcast.lane.b32.xlu0 %v495, 256
        %v498 = vpop.permute.xlu0 %497
        %v499 = vlaneseq
        %v500 = vshrl.u32 %v499, 7
        %v501 = vsub.s32 6, %v500
        %v502 = vrot.slane %v456, %v501
        %504 = vbcast.lane.b32.xlu0 %v502, 256
        %v505 = vpop.permute.xlu0 %504
        %v506 = vlaneseq
        %v507 = vshrl.u32 %v506, 7
        %v508 = vsub.s32 7, %v507
        %v509 = vrot.slane %v456, %v508
        %511 = vbcast.lane.b32.xlu0 %v509, 256
        %v512 = vpop.permute.xlu0 %511
        %vm513 = vcmp.eq.s32.totalorder %v463, %v290
        %vm514 = vcmp.eq.s32.totalorder %v463, %v291
        %vm515 = vcmp.eq.s32.totalorder %v470, %v290
        %vm516 = vcmp.eq.s32.totalorder %v470, %v291
        %vm517 = vcmp.eq.s32.totalorder %v477, %v290
        %vm518 = vcmp.eq.s32.totalorder %v477, %v291
        %vm519 = vcmp.eq.s32.totalorder %v484, %v290
        %vm520 = vcmp.eq.s32.totalorder %v484, %v291
        %vm521 = vcmp.eq.s32.totalorder %v491, %v290
        %vm522 = vcmp.eq.s32.totalorder %v491, %v291
        %vm523 = vcmp.eq.s32.totalorder %v498, %v290
        %vm524 = vcmp.eq.s32.totalorder %v498, %v291
        %vm525 = vcmp.eq.s32.totalorder %v505, %v290
        %vm526 = vcmp.eq.s32.totalorder %v505, %v291
        %vm527 = vcmp.eq.s32.totalorder %v512, %v290
        %vm528 = vcmp.eq.s32.totalorder %v512, %v291
        %vm529 = vmor %vm439, %vm513
        %vm530 = vmor %vm440, %vm514
        %vm531 = vmor %vm441, %vm515
        %vm532 = vmor %vm442, %vm516
        %vm533 = vmor %vm443, %vm517
        %vm534 = vmor %vm444, %vm518
        %vm535 = vmor %vm445, %vm519
        %vm536 = vmor %vm446, %vm520
        %vm537 = vmor %vm447, %vm521
        %vm538 = vmor %vm448, %vm522
        %vm539 = vmor %vm449, %vm523
        %vm540 = vmor %vm450, %vm524
        %vm541 = vmor %vm451, %vm525
        %vm542 = vmor %vm452, %vm526
        %vm543 = vmor %vm453, %vm527
        %vm544 = vmor %vm454, %vm528
        %s545 = scalar_lea.vmem %s259, 24 [#allocation2]
        %v546 = vld [vmem:[%s545] sm:$0xff]
        %v547 = vlaneseq
        %v548 = vshrl.u32 %v547, 7
        %v549 = vsub.s32 0, %v548
        %v550 = vrot.slane %v546, %v549
        %552 = vbcast.lane.b32.xlu0 %v550, 256
        %v553 = vpop.permute.xlu0 %552
        %v554 = vlaneseq
        %v555 = vshrl.u32 %v554, 7
        %v556 = vsub.s32 1, %v555
        %v557 = vrot.slane %v546, %v556
        %559 = vbcast.lane.b32.xlu0 %v557, 256
        %v560 = vpop.permute.xlu0 %559
        %v561 = vlaneseq
        %v562 = vshrl.u32 %v561, 7
        %v563 = vsub.s32 2, %v562
        %v564 = vrot.slane %v546, %v563
        %566 = vbcast.lane.b32.xlu0 %v564, 256
        %v567 = vpop.permute.xlu0 %566
        %v568 = vlaneseq
        %v569 = vshrl.u32 %v568, 7
        %v570 = vsub.s32 3, %v569
        %v571 = vrot.slane %v546, %v570
        %573 = vbcast.lane.b32.xlu0 %v571, 256
        %v574 = vpop.permute.xlu0 %573
        %v575 = vlaneseq
        %v576 = vshrl.u32 %v575, 7
        %v577 = vsub.s32 4, %v576
        %v578 = vrot.slane %v546, %v577
        %580 = vbcast.lane.b32.xlu0 %v578, 256
        %v581 = vpop.permute.xlu0 %580
        %v582 = vlaneseq
        %v583 = vshrl.u32 %v582, 7
        %v584 = vsub.s32 5, %v583
        %v585 = vrot.slane %v546, %v584
        %587 = vbcast.lane.b32.xlu0 %v585, 256
        %v588 = vpop.permute.xlu0 %587
        %v589 = vlaneseq
        %v590 = vshrl.u32 %v589, 7
        %v591 = vsub.s32 6, %v590
        %v592 = vrot.slane %v546, %v591
        %594 = vbcast.lane.b32.xlu0 %v592, 256
        %v595 = vpop.permute.xlu0 %594
        %v596 = vlaneseq
        %v597 = vshrl.u32 %v596, 7
        %v598 = vsub.s32 7, %v597
        %v599 = vrot.slane %v546, %v598
        %601 = vbcast.lane.b32.xlu0 %v599, 256
        %v602 = vpop.permute.xlu0 %601
        %vm603 = vcmp.eq.s32.totalorder %v553, %v290
        %vm604 = vcmp.eq.s32.totalorder %v553, %v291
        %vm605 = vcmp.eq.s32.totalorder %v560, %v290
        %vm606 = vcmp.eq.s32.totalorder %v560, %v291
        %vm607 = vcmp.eq.s32.totalorder %v567, %v290
        %vm608 = vcmp.eq.s32.totalorder %v567, %v291
        %vm609 = vcmp.eq.s32.totalorder %v574, %v290
        %vm610 = vcmp.eq.s32.totalorder %v574, %v291
        %vm611 = vcmp.eq.s32.totalorder %v581, %v290
        %vm612 = vcmp.eq.s32.totalorder %v581, %v291
        %vm613 = vcmp.eq.s32.totalorder %v588, %v290
        %vm614 = vcmp.eq.s32.totalorder %v588, %v291
        %vm615 = vcmp.eq.s32.totalorder %v595, %v290
        %vm616 = vcmp.eq.s32.totalorder %v595, %v291
        %vm617 = vcmp.eq.s32.totalorder %v602, %v290
        %vm618 = vcmp.eq.s32.totalorder %v602, %v291
        %vm619 = vmor %vm529, %vm603
        %vm620 = vmor %vm530, %vm604
        %vm621 = vmor %vm531, %vm605
        %vm622 = vmor %vm532, %vm606
        %vm623 = vmor %vm533, %vm607
        %vm624 = vmor %vm534, %vm608
        %vm625 = vmor %vm535, %vm609
        %vm626 = vmor %vm536, %vm610
        %vm627 = vmor %vm537, %vm611
        %vm628 = vmor %vm538, %vm612
        %vm629 = vmor %vm539, %vm613
        %vm630 = vmor %vm540, %vm614
        %vm631 = vmor %vm541, %vm615
        %vm632 = vmor %vm542, %vm616
        %vm633 = vmor %vm543, %vm617
        %vm634 = vmor %vm544, %vm618
        %s635 = scalar_lea.vmem %s259, 32 [#allocation2]
        %v636 = vld [vmem:[%s635] sm:$0xff]
        %v637 = vlaneseq
        %v638 = vshrl.u32 %v637, 7
        %v639 = vsub.s32 0, %v638
        %v640 = vrot.slane %v636, %v639
        %642 = vbcast.lane.b32.xlu0 %v640, 256
        %v643 = vpop.permute.xlu0 %642
        %v644 = vlaneseq
        %v645 = vshrl.u32 %v644, 7
        %v646 = vsub.s32 1, %v645
        %v647 = vrot.slane %v636, %v646
        %649 = vbcast.lane.b32.xlu0 %v647, 256
        %v650 = vpop.permute.xlu0 %649
        %v651 = vlaneseq
        %v652 = vshrl.u32 %v651, 7
        %v653 = vsub.s32 2, %v652
        %v654 = vrot.slane %v636, %v653
        %656 = vbcast.lane.b32.xlu0 %v654, 256
        %v657 = vpop.permute.xlu0 %656
        %v658 = vlaneseq
        %v659 = vshrl.u32 %v658, 7
        %v660 = vsub.s32 3, %v659
        %v661 = vrot.slane %v636, %v660
        %663 = vbcast.lane.b32.xlu0 %v661, 256
        %v664 = vpop.permute.xlu0 %663
        %v665 = vlaneseq
        %v666 = vshrl.u32 %v665, 7
        %v667 = vsub.s32 4, %v666
        %v668 = vrot.slane %v636, %v667
        %670 = vbcast.lane.b32.xlu0 %v668, 256
        %v671 = vpop.permute.xlu0 %670
        %v672 = vlaneseq
        %v673 = vshrl.u32 %v672, 7
        %v674 = vsub.s32 5, %v673
        %v675 = vrot.slane %v636, %v674
        %677 = vbcast.lane.b32.xlu0 %v675, 256
        %v678 = vpop.permute.xlu0 %677
        %v679 = vlaneseq
        %v680 = vshrl.u32 %v679, 7
        %v681 = vsub.s32 6, %v680
        %v682 = vrot.slane %v636, %v681
        %684 = vbcast.lane.b32.xlu0 %v682, 256
        %v685 = vpop.permute.xlu0 %684
        %v686 = vlaneseq
        %v687 = vshrl.u32 %v686, 7
        %v688 = vsub.s32 7, %v687
        %v689 = vrot.slane %v636, %v688
        %691 = vbcast.lane.b32.xlu0 %v689, 256
        %v692 = vpop.permute.xlu0 %691
        %vm693 = vcmp.eq.s32.totalorder %v643, %v290
        %vm694 = vcmp.eq.s32.totalorder %v643, %v291
        %vm695 = vcmp.eq.s32.totalorder %v650, %v290
        %vm696 = vcmp.eq.s32.totalorder %v650, %v291
        %vm697 = vcmp.eq.s32.totalorder %v657, %v290
        %vm698 = vcmp.eq.s32.totalorder %v657, %v291
        %vm699 = vcmp.eq.s32.totalorder %v664, %v290
        %vm700 = vcmp.eq.s32.totalorder %v664, %v291
        %vm701 = vcmp.eq.s32.totalorder %v671, %v290
        %vm702 = vcmp.eq.s32.totalorder %v671, %v291
        %vm703 = vcmp.eq.s32.totalorder %v678, %v290
        %vm704 = vcmp.eq.s32.totalorder %v678, %v291
        %vm705 = vcmp.eq.s32.totalorder %v685, %v290
        %vm706 = vcmp.eq.s32.totalorder %v685, %v291
        %vm707 = vcmp.eq.s32.totalorder %v692, %v290
        %vm708 = vcmp.eq.s32.totalorder %v692, %v291
        %vm709 = vmor %vm619, %vm693
        %vm710 = vmor %vm620, %vm694
        %vm711 = vmor %vm621, %vm695
        %vm712 = vmor %vm622, %vm696
        %vm713 = vmor %vm623, %vm697
        %vm714 = vmor %vm624, %vm698
        %vm715 = vmor %vm625, %vm699
        %vm716 = vmor %vm626, %vm700
        %vm717 = vmor %vm627, %vm701
        %vm718 = vmor %vm628, %vm702
        %vm719 = vmor %vm629, %vm703
        %vm720 = vmor %vm630, %vm704
        %vm721 = vmor %vm631, %vm705
        %vm722 = vmor %vm632, %vm706
        %vm723 = vmor %vm633, %vm707
        %vm724 = vmor %vm634, %vm708
        %v725 = vsel %vm709, 1, 0
        %v726 = vsel %vm710, 1, 0
        %v727 = vsel %vm711, 1, 0
        %v728 = vsel %vm712, 1, 0
        %v729 = vsel %vm713, 1, 0
        %v730 = vsel %vm714, 1, 0
        %v731 = vsel %vm715, 1, 0
        %v732 = vsel %vm716, 1, 0
        %v733 = vsel %vm717, 1, 0
        %v734 = vsel %vm718, 1, 0
        %v735 = vsel %vm719, 1, 0
        %v736 = vsel %vm720, 1, 0
        %v737 = vsel %vm721, 1, 0
        %v738 = vsel %vm722, 1, 0
        %v739 = vsel %vm723, 1, 0
        %v740 = vsel %vm724, 1, 0
        %v741 = vcvt.s32.f32 %v725
        %v742 = vcvt.s32.f32 %v726
        %v743 = vcvt.s32.f32 %v727
        %v744 = vcvt.s32.f32 %v728
        %v745 = vcvt.s32.f32 %v729
        %v746 = vcvt.s32.f32 %v730
        %v747 = vcvt.s32.f32 %v731
        %v748 = vcvt.s32.f32 %v732
        %v749 = vcvt.s32.f32 %v733
        %v750 = vcvt.s32.f32 %v734
        %v751 = vcvt.s32.f32 %v735
        %v752 = vcvt.s32.f32 %v736
        %v753 = vcvt.s32.f32 %v737
        %v754 = vcvt.s32.f32 %v738
        %v755 = vcvt.s32.f32 %v739
        %v756 = vcvt.s32.f32 %v740
        %v757 = vpack.c.bf16 %v741, %v741
        %v758 = vpack.c.bf16 %v742, %v742
        %v759 = vpack.c.bf16 %v743, %v743
        %v760 = vpack.c.bf16 %v744, %v744
        %v761 = vpack.c.bf16 %v745, %v745
        %v762 = vpack.c.bf16 %v746, %v746
        %v763 = vpack.c.bf16 %v747, %v747
        %v764 = vpack.c.bf16 %v748, %v748
        %v765 = vpack.c.bf16 %v749, %v749
        %v766 = vpack.c.bf16 %v750, %v750
        %v767 = vpack.c.bf16 %v751, %v751
        %v768 = vpack.c.bf16 %v752, %v752
        %v769 = vpack.c.bf16 %v753, %v753
        %v770 = vpack.c.bf16 %v754, %v754
        %v771 = vpack.c.bf16 %v755, %v755
        %v772 = vpack.c.bf16 %v756, %v756
        %v789 = vunpack.c.l.b16 %v757
        %v790 = vunpack.c.l.b16 %v758
        %v791 = vunpack.c.l.b16 %v759
        %v792 = vunpack.c.l.b16 %v760
        %v793 = vunpack.c.l.b16 %v761
        %v794 = vunpack.c.l.b16 %v762
        %v795 = vunpack.c.l.b16 %v763
        %v796 = vunpack.c.l.b16 %v764
        %v797 = vunpack.c.l.b16 %v765
        %v798 = vunpack.c.l.b16 %v766
        %v799 = vunpack.c.l.b16 %v767
        %v800 = vunpack.c.l.b16 %v768
        %v801 = vunpack.c.l.b16 %v769
        %v802 = vunpack.c.l.b16 %v770
        %v803 = vunpack.c.l.b16 %v771
        %v804 = vunpack.c.l.b16 %v772
        %v805 = vld [vmem:[#allocation3] sm:$0xf]
        %v806 = vld [vmem:[#allocation3 + $0x4] sm:$0xf]
        %v807 = vld [vmem:[#allocation3 + $0x8] sm:$0xf]
        %v808 = vld [vmem:[#allocation3 + $0xc] sm:$0xf]
        %v809 = vld [vmem:[#allocation3 + $0x10] sm:$0xf]
        %v810 = vld [vmem:[#allocation3 + $0x14] sm:$0xf]
        %v811 = vld [vmem:[#allocation3 + $0x18] sm:$0xf]
        %v812 = vld [vmem:[#allocation3 + $0x1c] sm:$0xf]
        %v813 = vld [vmem:[#allocation3 + $0x20] sm:$0xf]
        %v814 = vld [vmem:[#allocation3 + $0x24] sm:$0xf]
        %v815 = vld [vmem:[#allocation3 + $0x28] sm:$0xf]
        %v816 = vld [vmem:[#allocation3 + $0x2c] sm:$0xf]
        %v817 = vld [vmem:[#allocation3 + $0x30] sm:$0xf]
        %v818 = vld [vmem:[#allocation3 + $0x34] sm:$0xf]
        %v819 = vld [vmem:[#allocation3 + $0x38] sm:$0xf]
        %v820 = vld [vmem:[#allocation3 + $0x3c] sm:$0xf]
        %v821 = vld [vmem:[#allocation3 + $0x40] sm:$0xf]
        %v822 = vld [vmem:[#allocation3 + $0x44] sm:$0xf]
        %v823 = vld [vmem:[#allocation3 + $0x48] sm:$0xf]
        %v824 = vld [vmem:[#allocation3 + $0x4c] sm:$0xf]
        %v825 = vld [vmem:[#allocation3 + $0x50] sm:$0xf]
        %v826 = vld [vmem:[#allocation3 + $0x54] sm:$0xf]
        %v827 = vld [vmem:[#allocation3 + $0x58] sm:$0xf]
        %v828 = vld [vmem:[#allocation3 + $0x5c] sm:$0xf]
        %v829 = vld [vmem:[#allocation3 + $0x60] sm:$0xf]
        %v830 = vld [vmem:[#allocation3 + $0x64] sm:$0xf]
        %v831 = vld [vmem:[#allocation3 + $0x68] sm:$0xf]
        %v832 = vld [vmem:[#allocation3 + $0x6c] sm:$0xf]
        %v833 = vld [vmem:[#allocation3 + $0x70] sm:$0xf]
        %v834 = vld [vmem:[#allocation3 + $0x74] sm:$0xf]
        %v835 = vld [vmem:[#allocation3 + $0x78] sm:$0xf]
        %v836 = vld [vmem:[#allocation3 + $0x7c] sm:$0xf]
        %v837 = vpack.c.b16 %v791, %v789
        %v838 = vpack.c.b16 %v792, %v790
        %v839 = vpack.c.b16 %v795, %v793
        %v840 = vpack.c.b16 %v796, %v794
        %v841 = vpack.c.b16 %v799, %v797
        %v842 = vpack.c.b16 %v800, %v798
        %v843 = vpack.c.b16 %v803, %v801
        %v844 = vpack.c.b16 %v804, %v802
        %v885 = vunpack.c.l.b16 %v805
        %v886 = vunpack.c.l.b16 %v806
        %v887 = vunpack.c.l.b16 %v807
        %v888 = vunpack.c.l.b16 %v808
        %v889 = vunpack.c.l.b16 %v809
        %v890 = vunpack.c.l.b16 %v810
        %v891 = vunpack.c.l.b16 %v811
        %v892 = vunpack.c.l.b16 %v812
        %v893 = vunpack.c.l.b16 %v813
        %v894 = vunpack.c.l.b16 %v814
        %v895 = vunpack.c.l.b16 %v815
        %v896 = vunpack.c.l.b16 %v816
        %v897 = vunpack.c.l.b16 %v817
        %v898 = vunpack.c.l.b16 %v818
        %v899 = vunpack.c.l.b16 %v819
        %v900 = vunpack.c.l.b16 %v820
        %v901 = vunpack.c.l.b16 %v821
        %v902 = vunpack.c.l.b16 %v822
        %v903 = vunpack.c.l.b16 %v823
        %v904 = vunpack.c.l.b16 %v824
        %v905 = vunpack.c.l.b16 %v825
        %v906 = vunpack.c.l.b16 %v826
        %v907 = vunpack.c.l.b16 %v827
        %v908 = vunpack.c.l.b16 %v828
        %v909 = vunpack.c.l.b16 %v829
        %v910 = vunpack.c.l.b16 %v830
        %v911 = vunpack.c.l.b16 %v831
        %v912 = vunpack.c.l.b16 %v832
        %v913 = vunpack.c.l.b16 %v833
        %v914 = vunpack.c.l.b16 %v834
        %v915 = vunpack.c.l.b16 %v835
        %v916 = vunpack.c.l.b16 %v836
        %v917 = vpack.c.b16 %v886, %v885
        %v918 = vpack.c.b16 %v888, %v887
        %v919 = vpack.c.b16 %v890, %v889
        %v920 = vpack.c.b16 %v892, %v891
        %v921 = vpack.c.b16 %v894, %v893
        %v922 = vpack.c.b16 %v896, %v895
        %v923 = vpack.c.b16 %v898, %v897
        %v924 = vpack.c.b16 %v900, %v899
        %v925 = vpack.c.b16 %v902, %v901
        %v926 = vpack.c.b16 %v904, %v903
        %v927 = vpack.c.b16 %v906, %v905
        %v928 = vpack.c.b16 %v908, %v907
        %v929 = vpack.c.b16 %v910, %v909
        %v930 = vpack.c.b16 %v912, %v911
        %v931 = vpack.c.b16 %v914, %v913
        %v932 = vpack.c.b16 %v916, %v915
        %949 = vmatprep.subr.bf16.mxu0 0
        %950 = vmatpush1.bf16.msra.mxu0 %v917
        %951 = vmatprep.subr.bf16.mxu0 0
        %952 = vmatpush1.bf16.msra.mxu0 %v918
        %953 = vmatprep.subr.bf16.mxu0 0
        %954 = vmatpush1.bf16.msra.mxu0 %v919
        %955 = vmatprep.subr.bf16.mxu0 0
        %956 = vmatpush1.bf16.msra.mxu0 %v920
        %957 = vmatprep.subr.bf16.mxu0 0
        %958 = vmatpush1.bf16.msra.mxu0 %v921
        %959 = vmatprep.subr.bf16.mxu0 0
        %960 = vmatpush1.bf16.msra.mxu0 %v922
        %961 = vmatprep.subr.bf16.mxu0 0
        %962 = vmatpush1.bf16.msra.mxu0 %v923
        %963 = vmatprep.subr.bf16.mxu0 0
        %964 = vmatpush1.bf16.msra.mxu0 %v924
        %965 = vmatprep.subr.bf16.mxu0 0
        %966 = vmatpush1.bf16.msra.mxu0 %v925
        %967 = vmatprep.subr.bf16.mxu0 0
        %968 = vmatpush1.bf16.msra.mxu0 %v926
        %969 = vmatprep.subr.bf16.mxu0 0
        %970 = vmatpush1.bf16.msra.mxu0 %v927
        %971 = vmatprep.subr.bf16.mxu0 0
        %972 = vmatpush1.bf16.msra.mxu0 %v928
        %973 = vmatprep.subr.bf16.mxu0 0
        %974 = vmatpush1.bf16.msra.mxu0 %v929
        %975 = vmatprep.subr.bf16.mxu0 0
        %976 = vmatpush1.bf16.msra.mxu0 %v930
        %977 = vmatprep.subr.bf16.mxu0 0
        %978 = vmatpush1.bf16.msra.mxu0 %v931
        %979 = vmatprep.subr.bf16.mxu0 0
        %980 = vmatpush1.bf16.msra.mxu0 %v932
        %981 = vmatprep.mubr.bf16.mxu0 %v838
        %982 = vmatmul.mubr.bf16.gmra.mrb[0].mxu0 %v837
        %v983 = vpop.f32.mrb[0].mxu0
        %v984 = vadd.f32 0.0, %v983
        %v985 = vpop.f32.mrb[0].mxu0
        %v986 = vpop.f32.mrb[0].mxu0
        %v987 = vadd.f32 0.0, %v986
        %v988 = vpop.f32.mrb[0].mxu0
        %989 = vmatprep.mubr.bf16.mxu0 %v840
        %990 = vmatmul.mubr.bf16.gmra.mrb[0].mxu0 %v839
        %v991 = vpop.f32.mrb[0].mxu0
        %v992 = vadd.f32 0.0, %v991
        %v993 = vpop.f32.mrb[0].mxu0
        %v994 = vpop.f32.mrb[0].mxu0
        %v995 = vadd.f32 0.0, %v994
        %v996 = vpop.f32.mrb[0].mxu0
        %997 = vmatprep.mubr.bf16.mxu0 %v842
        %998 = vmatmul.mubr.bf16.gmra.mrb[0].mxu0 %v841
        %v999 = vpop.f32.mrb[0].mxu0
        %v1000 = vadd.f32 0.0, %v999
        %v1001 = vpop.f32.mrb[0].mxu0
        %v1002 = vpop.f32.mrb[0].mxu0
        %v1003 = vadd.f32 0.0, %v1002
        %v1004 = vpop.f32.mrb[0].mxu0
        %1005 = vmatprep.mubr.bf16.mxu0 %v844
        %1006 = vmatmul.mubr.bf16.gmra.mrb[0].mxu0 %v843
        %v1007 = vpop.f32.mrb[0].mxu0
        %v1008 = vadd.f32 0.0, %v1007
        %v1009 = vpop.f32.mrb[0].mxu0
        %v1010 = vpop.f32.mrb[0].mxu0
        %v1011 = vadd.f32 0.0, %v1010
        %v1012 = vpop.f32.mrb[0].mxu0
        %1013 = vdwg.mxu0
        %v1014 = vrot.slane %v984, 4
        %v1015 = vmax.f32 %v984, %v1014
        %v1016 = vrot.slane %v1015, 2
        %v1017 = vmax.f32 %v1015, %v1016
        %v1018 = vrot.slane %v1017, 1
        %v1019 = vmax.f32 %v1017, %v1018
        %v1020 = vrot.slane %v987, 4
        %v1021 = vmax.f32 %v987, %v1020
        %v1022 = vrot.slane %v1021, 2
        %v1023 = vmax.f32 %v1021, %v1022
        %v1024 = vrot.slane %v1023, 1
        %v1025 = vmax.f32 %v1023, %v1024
        %v1026 = vrot.slane %v992, 4
        %v1027 = vmax.f32 %v992, %v1026
        %v1028 = vrot.slane %v1027, 2
        %v1029 = vmax.f32 %v1027, %v1028
        %v1030 = vrot.slane %v1029, 1
        %v1031 = vmax.f32 %v1029, %v1030
        %v1032 = vrot.slane %v995, 4
        %v1033 = vmax.f32 %v995, %v1032
        %v1034 = vrot.slane %v1033, 2
        %v1035 = vmax.f32 %v1033, %v1034
        %v1036 = vrot.slane %v1035, 1
        %v1037 = vmax.f32 %v1035, %v1036
        %v1038 = vrot.slane %v1000, 4
        %v1039 = vmax.f32 %v1000, %v1038
        %v1040 = vrot.slane %v1039, 2
        %v1041 = vmax.f32 %v1039, %v1040
        %v1042 = vrot.slane %v1041, 1
        %v1043 = vmax.f32 %v1041, %v1042
        %v1044 = vrot.slane %v1003, 4
        %v1045 = vmax.f32 %v1003, %v1044
        %v1046 = vrot.slane %v1045, 2
        %v1047 = vmax.f32 %v1045, %v1046
        %v1048 = vrot.slane %v1047, 1
        %v1049 = vmax.f32 %v1047, %v1048
        %v1050 = vrot.slane %v1008, 4
        %v1051 = vmax.f32 %v1008, %v1050
        %v1052 = vrot.slane %v1051, 2
        %v1053 = vmax.f32 %v1051, %v1052
        %v1054 = vrot.slane %v1053, 1
        %v1055 = vmax.f32 %v1053, %v1054
        %v1056 = vrot.slane %v1011, 4
        %v1057 = vmax.f32 %v1011, %v1056
        %v1058 = vrot.slane %v1057, 2
        %v1059 = vmax.f32 %v1057, %v1058
        %v1060 = vrot.slane %v1059, 1
        %v1061 = vmax.f32 %v1059, %v1060
        %v1062 = vld [vmem:[%s2] sm:$0x1]
        %v1064 = vlaneseq
        %v1065 = vshrl.u32 %v1064, 7
        %v1066 = vsub.s32 0, %v1065
        %v1067 = vrot.slane %v1062, %v1066
        %v1069 = vadd.f32 %v1019, %v1067
        %v1070 = vadd.f32 %v1025, %v1067
        %v1071 = vadd.f32 %v1031, %v1067
        %v1072 = vadd.f32 %v1037, %v1067
        %v1073 = vadd.f32 %v1043, %v1067
        %v1074 = vadd.f32 %v1049, %v1067
        %v1075 = vadd.f32 %v1055, %v1067
        %v1076 = vadd.f32 %v1061, %v1067
        %v1077 = vmax.f32 %v1069, 0.0
        %v1078 = vmax.f32 %v1070, 0.0
        %v1079 = vmax.f32 %v1071, 0.0
        %v1080 = vmax.f32 %v1072, 0.0
        %v1081 = vmax.f32 %v1073, 0.0
        %v1082 = vmax.f32 %v1074, 0.0
        %v1083 = vmax.f32 %v1075, 0.0
        %v1084 = vmax.f32 %v1076, 0.0
        %v1085 = vpack.c.bf16 %v1077, %v1077
        %v1086 = vpack.c.bf16 %v1078, %v1078
        %v1087 = vpack.c.bf16 %v1079, %v1079
        %v1088 = vpack.c.bf16 %v1080, %v1080
        %v1089 = vpack.c.bf16 %v1081, %v1081
        %v1090 = vpack.c.bf16 %v1082, %v1082
        %v1091 = vpack.c.bf16 %v1083, %v1083
        %v1092 = vpack.c.bf16 %v1084, %v1084
        %v1093 = vld [vmem:[%s3] sm:$0xff]
        %v1094 = vld [vmem:[%s3 + $0x8] sm:$0xff]
        %v1095 = vld [vmem:[%s3 + $0x10] sm:$0xff]
        %v1096 = vld [vmem:[%s3 + $0x18] sm:$0xff]
        %v1097 = vld [vmem:[%s3 + $0x20] sm:$0xff]
        %v1098 = vld [vmem:[%s3 + $0x28] sm:$0xff]
        %v1099 = vld [vmem:[%s3 + $0x30] sm:$0xff]
        %v1100 = vld [vmem:[%s3 + $0x38] sm:$0xff]
        %v1101 = vld [vmem:[%s3 + $0x40] sm:$0xff]
        %v1102 = vld [vmem:[%s3 + $0x48] sm:$0xff]
        %v1103 = vld [vmem:[%s3 + $0x50] sm:$0xff]
        %v1104 = vld [vmem:[%s3 + $0x58] sm:$0xff]
        %v1105 = vld [vmem:[%s3 + $0x60] sm:$0xff]
        %v1106 = vld [vmem:[%s3 + $0x68] sm:$0xff]
        %v1107 = vld [vmem:[%s3 + $0x70] sm:$0xff]
        %v1108 = vld [vmem:[%s3 + $0x78] sm:$0xff]
        %v1109 = vld [vmem:[%s4] sm:$0x3]
        %v1111 = vlaneseq
        %v1112 = vshrl.u32 %v1111, 7
        %v1113 = vsub.s32 0, %v1112
        %v1114 = vrot.slane %v1109, %v1113
        %v1115 = vlaneseq
        %v1116 = vshrl.u32 %v1115, 7
        %v1117 = vsub.s32 1, %v1116
        %v1118 = vrot.slane %v1109, %v1117
        %v1129 = vunpack.c.l.b16 %v1085
        %v1130 = vunpack.c.l.b16 %v1086
        %v1131 = vunpack.c.l.b16 %v1087
        %v1132 = vunpack.c.l.b16 %v1088
        %v1133 = vunpack.c.l.b16 %v1089
        %v1134 = vunpack.c.l.b16 %v1090
        %v1135 = vunpack.c.l.b16 %v1091
        %v1136 = vunpack.c.l.b16 %v1092
        %v1137 = vrot.slane %v1130, 7
        %vm1138 = vcmask 1041409
        %v1139 = vsel %vm1138, %v1137, %v1129
        %v1140 = vrot.slane %v1131, 6
        %vm1141 = vcmask 1042434
        %v1142 = vsel %vm1141, %v1140, %v1139
        %v1143 = vrot.slane %v1132, 5
        %vm1144 = vcmask 1043459
        %v1145 = vsel %vm1144, %v1143, %v1142
        %v1146 = vrot.slane %v1133, 4
        %vm1147 = vcmask 1044484
        %v1148 = vsel %vm1147, %v1146, %v1145
        %v1149 = vrot.slane %v1134, 3
        %vm1150 = vcmask 1045509
        %v1151 = vsel %vm1150, %v1149, %v1148
        %v1152 = vrot.slane %v1135, 2
        %vm1153 = vcmask 1046534
        %v1154 = vsel %vm1153, %v1152, %v1151
        %v1155 = vrot.slane %v1136, 1
        %vm1156 = vcmask 1047559
        %v1157 = vsel %vm1156, %v1155, %v1154
        %v1158 = vpack.c.b16 %v1157, %v1157
        %v1176 = vunpack.c.l.b16 %v1093
        %v1177 = vunpack.c.h.b16 %v1093
        %v1178 = vunpack.c.l.b16 %v1094
        %v1179 = vunpack.c.h.b16 %v1094
        %v1180 = vunpack.c.l.b16 %v1095
        %v1181 = vunpack.c.h.b16 %v1095
        %v1182 = vunpack.c.l.b16 %v1096
        %v1183 = vunpack.c.h.b16 %v1096
        %v1184 = vunpack.c.l.b16 %v1097
        %v1185 = vunpack.c.h.b16 %v1097
        %v1186 = vunpack.c.l.b16 %v1098
        %v1187 = vunpack.c.h.b16 %v1098
        %v1188 = vunpack.c.l.b16 %v1099
        %v1189 = vunpack.c.h.b16 %v1099
        %v1190 = vunpack.c.l.b16 %v1100
        %v1191 = vunpack.c.h.b16 %v1100
        %v1192 = vunpack.c.l.b16 %v1101
        %v1193 = vunpack.c.h.b16 %v1101
        %v1194 = vunpack.c.l.b16 %v1102
        %v1195 = vunpack.c.h.b16 %v1102
        %v1196 = vunpack.c.l.b16 %v1103
        %v1197 = vunpack.c.h.b16 %v1103
        %v1198 = vunpack.c.l.b16 %v1104
        %v1199 = vunpack.c.h.b16 %v1104
        %v1200 = vunpack.c.l.b16 %v1105
        %v1201 = vunpack.c.h.b16 %v1105
        %v1202 = vunpack.c.l.b16 %v1106
        %v1203 = vunpack.c.h.b16 %v1106
        %v1204 = vunpack.c.l.b16 %v1107
        %v1205 = vunpack.c.h.b16 %v1107
        %v1206 = vunpack.c.l.b16 %v1108
        %v1207 = vunpack.c.h.b16 %v1108
        %v1208 = vpack.c.b16 %v1178, %v1176
        %v1209 = vpack.c.b16 %v1179, %v1177
        %v1210 = vpack.c.b16 %v1182, %v1180
        %v1211 = vpack.c.b16 %v1183, %v1181
        %v1212 = vpack.c.b16 %v1186, %v1184
        %v1213 = vpack.c.b16 %v1187, %v1185
        %v1214 = vpack.c.b16 %v1190, %v1188
        %v1215 = vpack.c.b16 %v1191, %v1189
        %v1216 = vpack.c.b16 %v1194, %v1192
        %v1217 = vpack.c.b16 %v1195, %v1193
        %v1218 = vpack.c.b16 %v1198, %v1196
        %v1219 = vpack.c.b16 %v1199, %v1197
        %v1220 = vpack.c.b16 %v1202, %v1200
        %v1221 = vpack.c.b16 %v1203, %v1201
        %v1222 = vpack.c.b16 %v1206, %v1204
        %v1223 = vpack.c.b16 %v1207, %v1205
        %1240 = vmatprep.subr.bf16.mxu0 %v1209
        %1241 = vmatpush1.bf16.msra.mxu0 %v1208
        %1242 = vmatprep.subr.bf16.mxu0 %v1211
        %1243 = vmatpush1.bf16.msra.mxu0 %v1210
        %1244 = vmatprep.subr.bf16.mxu0 %v1213
        %1245 = vmatpush1.bf16.msra.mxu0 %v1212
        %1246 = vmatprep.subr.bf16.mxu0 %v1215
        %1247 = vmatpush1.bf16.msra.mxu0 %v1214
        %1248 = vmatprep.subr.bf16.mxu0 %v1217
        %1249 = vmatpush1.bf16.msra.mxu0 %v1216
        %1250 = vmatprep.subr.bf16.mxu0 %v1219
        %1251 = vmatpush1.bf16.msra.mxu0 %v1218
        %1252 = vmatprep.subr.bf16.mxu0 %v1221
        %1253 = vmatpush1.bf16.msra.mxu0 %v1220
        %1254 = vmatprep.subr.bf16.mxu0 %v1223
        %1255 = vmatpush1.bf16.msra.mxu0 %v1222
        %1256 = vmatprep.subr.bf16.mxu0 0
        %1257 = vmatpush1.bf16.msra.mxu0 0
        %1258 = vmatprep.subr.bf16.mxu0 0
        %1259 = vmatpush1.bf16.msra.mxu0 0
        %1260 = vmatprep.subr.bf16.mxu0 0
        %1261 = vmatpush1.bf16.msra.mxu0 0
        %1262 = vmatprep.subr.bf16.mxu0 0
        %1263 = vmatpush1.bf16.msra.mxu0 0
        %1264 = vmatprep.subr.bf16.mxu0 0
        %1265 = vmatpush1.bf16.msra.mxu0 0
        %1266 = vmatprep.subr.bf16.mxu0 0
        %1267 = vmatpush1.bf16.msra.mxu0 0
        %1268 = vmatprep.subr.bf16.mxu0 0
        %1269 = vmatpush1.bf16.msra.mxu0 0
        %1270 = vmatprep.subr.bf16.mxu0 0
        %1271 = vmatpush1.bf16.msra.mxu0 0
        %1272 = vmatprep.mubr.bf16.mxu0 0
        %1273 = vmatmul.mubr.bf16.gmra.mrb[0].mxu0 %v1158
        %v1274 = vpop.f32.mrb[0].mxu0
        %v1275 = vadd.f32 %v1114, %v1274
        %v1276 = vpop.f32.mrb[0].mxu0
        %v1277 = vadd.f32 %v1118, %v1276
        %v1278 = vpop.f32.mrb[0].mxu0
        %v1279 = vpop.f32.mrb[0].mxu0
        %1280 = vdwg.mxu0
        %v1281 = vmax.f32 %v1275, 0.0
        %v1282 = vsub.f32 0.0, %v1277
        %v1283 = vmul.f32 %v1282, 1.442695
        %v1284 = vpow.pop %v1283
        %v1285 = vadd.f32 %v1284, 1.0
        %v1286 = vrcp.pop %v1285
        %v1295 = vrot.slane %v1078, 7
        %v1296 = vsel %vm1138, %v1295, %v1077
        %v1297 = vrot.slane %v1079, 6
        %v1298 = vsel %vm1141, %v1297, %v1296
        %v1299 = vrot.slane %v1080, 5
        %v1300 = vsel %vm1144, %v1299, %v1298
        %v1301 = vrot.slane %v1081, 4
        %v1302 = vsel %vm1147, %v1301, %v1300
        %v1303 = vrot.slane %v1082, 3
        %v1304 = vsel %vm1150, %v1303, %v1302
        %v1305 = vrot.slane %v1083, 2
        %v1306 = vsel %vm1153, %v1305, %v1304
        %v1307 = vrot.slane %v1084, 1
        %v1308 = vsel %vm1156, %v1307, %v1306
        %v1310 = vsub.f32 %v1281, %v1308
        %v1311 = vmul.f32 %v1286, %v1310
        %v1313 = vrot.slane %v1311, 1
        %v1314 = vrot.slane %v1311, 2
        %v1315 = vrot.slane %v1311, 3
        %v1316 = vrot.slane %v1311, 4
        %v1317 = vrot.slane %v1311, 5
        %v1318 = vrot.slane %v1311, 6
        %v1319 = vrot.slane %v1311, 7
        %v1328 = vadd.f32 %v1077, %v1311
        %v1329 = vadd.f32 %v1078, %v1313
        %v1330 = vadd.f32 %v1079, %v1314
        %v1331 = vadd.f32 %v1080, %v1315
        %v1332 = vadd.f32 %v1081, %v1316
        %v1333 = vadd.f32 %v1082, %v1317
        %v1334 = vadd.f32 %v1083, %v1318
        %v1335 = vadd.f32 %v1084, %v1319
        %v1336 = vpack.c.bf16 %v1328, %v1328
        %v1337 = vpack.c.bf16 %v1329, %v1329
        %v1338 = vpack.c.bf16 %v1330, %v1330
        %v1339 = vpack.c.bf16 %v1331, %v1331
        %v1340 = vpack.c.bf16 %v1332, %v1332
        %v1341 = vpack.c.bf16 %v1333, %v1333
        %v1342 = vpack.c.bf16 %v1334, %v1334
        %v1343 = vpack.c.bf16 %v1335, %v1335
        %v1352 = vunpack.c.l.b16 %v1336
        %v1353 = vunpack.c.l.b16 %v1337
        %v1354 = vunpack.c.l.b16 %v1338
        %v1355 = vunpack.c.l.b16 %v1339
        %v1356 = vunpack.c.l.b16 %v1340
        %v1357 = vunpack.c.l.b16 %v1341
        %v1358 = vunpack.c.l.b16 %v1342
        %v1359 = vunpack.c.l.b16 %v1343
        %v1360 = vpack.c.b16 %v1352, %v1352
        %v1361 = vpack.c.b16 %v1353, %v1353
        %v1362 = vpack.c.b16 %v1354, %v1354
        %v1363 = vpack.c.b16 %v1355, %v1355
        %v1364 = vpack.c.b16 %v1356, %v1356
        %v1365 = vpack.c.b16 %v1357, %v1357
        %v1366 = vpack.c.b16 %v1358, %v1358
        %v1367 = vpack.c.b16 %v1359, %v1359
        %v1368 = vunpack.c.l.b16 %v1360
        %v1369 = vunpack.c.l.b16 %v1361
        %v1370 = vunpack.c.l.b16 %v1362
        %v1371 = vunpack.c.l.b16 %v1363
        %v1372 = vunpack.c.l.b16 %v1364
        %v1373 = vunpack.c.l.b16 %v1365
        %v1374 = vunpack.c.l.b16 %v1366
        %v1375 = vunpack.c.l.b16 %v1367
        %v1376 = vrot.slane %v1369, 7
        %v1377 = vsel %vm1138, %v1376, %v1368
        %v1378 = vrot.slane %v1370, 6
        %v1379 = vsel %vm1141, %v1378, %v1377
        %v1380 = vrot.slane %v1371, 5
        %v1381 = vsel %vm1144, %v1380, %v1379
        %v1382 = vrot.slane %v1372, 4
        %v1383 = vsel %vm1147, %v1382, %v1381
        %v1384 = vrot.slane %v1373, 3
        %v1385 = vsel %vm1150, %v1384, %v1383
        %v1386 = vrot.slane %v1374, 2
        %v1387 = vsel %vm1153, %v1386, %v1385
        %v1388 = vrot.slane %v1375, 1
        %v1389 = vsel %vm1156, %v1388, %v1387
        %v1390 = vpack.c.b16 %v1389, %v1389
        %1392 = vst [vmem:[%s287] sm:$0xf] %v1390
        %s1393 = sand.u32 %s138, 1
        %s1394 = scalar_lea.sflag [#allocation5], %s1393
        %s1395 = sand.u32 %s138, 1
        %s1396 = smul.addr %s1395, 4
        %s1397 = scalar_lea.vmem [#allocation6], %s1396
        // Predicated region
        $region83: #{tpu_custom_call.1} parent=73 // pred_check
          %p1398 = pneg %p148
        $region84: #{tpu_custom_call.1} parent=73 // pred_check_branch
          %1400 = sbr.rel (%p1398) target = $region86
        $region85: #{tpu_custom_call.1} parent=73 // pred_region
          %s1402 = ssub.s32 64, 64
          %1403 = vsyncadd %s1394, %s1402
          %s1404 = smul.addr %s20, 64
          %s1405 = scalar_lea.hbm %s5, %s1404
          %s1407 = sshll.u32 %s1397, 4
          %s1408 = int_to_ptr.vmem [resolvable:$true] %s1407
          %1410 = dma.vmem_to_hbm [thread:$0]  %s1408, 64, %s1405, %s1394
        $region86: #{tpu_custom_call.1} parent=73 // pred_fallthru
          _
      $region74: #{tpu_custom_call.1} parent=5 // pred_fallthru
        _
      %p1411 = scmp.le.s32.totalorder 2, %s15
      // Predicated region
      $region87: #{tpu_custom_call.1} parent=5 // pred_check
        %p1412 = pneg %p1411
      $region88: #{tpu_custom_call.1} parent=5 // pred_check_branch
        %1414 = sbr.rel (%p1412) target = $region90
      $region89: #{tpu_custom_call.1} parent=5 // pred_region
        %s1415 = ssub.s32 %s15, 2
        // Predicated region
        $region91: #{tpu_custom_call.1} parent=89 // pred_check
          %p1416 = pneg %p154
        $region92: #{tpu_custom_call.1} parent=89 // pred_check_branch
          %1418 = sbr.rel (%p1416) target = $region94
        $region93: #{tpu_custom_call.1} parent=89 // pred_region
          %s1419 = sand.u32 %s139, 1
          %s1420 = scalar_lea.sflag [#allocation5], %s1419
          %s1421 = sand.u32 %s139, 1
          %s1422 = smul.addr %s1421, 4
          %s1423 = scalar_lea.vmem [#allocation6], %s1422
          %1424 = dma.done %s1420, 64
        $region94: #{tpu_custom_call.1} parent=89 // pred_fallthru
          _
      $region90: #{tpu_custom_call.1} parent=5 // pred_fallthru
        _
    $region6: #{tpu_custom_call.1} parent=1 // loop_footer
      %s19 = sadd.s32 1, %s15
    $region7: #{tpu_custom_call.1} parent=1 // loop_footer_branch
      %14 = sbr.rel target = $region3
    $region8: #{tpu_custom_call.1} parent=1 // loop_exit
      _
    %1425 = vsyncpa [#allocation4], 1
    %s1426 = scalar_lea.sflag [#allocation4], 1
    %1427 = vsyncpa %s1426, 1
    %1428 = vsyncpa [#allocation5], 1
    %s1429 = scalar_lea.sflag [#allocation5], 1
    %1430 = vsyncpa %s1429, 1

</llo_original>
